<compile_context>
chip_gen: v7x
topology: tpu7x:2x2x1
jax: 0.10.0
libtpu: 0.0.40
codegen_flags: <defaults>
</compile_context>

<pallas_src>
import functools

import jax
import jax.numpy as jnp
from jax import lax
from jax.experimental import pallas as pl
from jax.experimental.pallas import tpu as pltpu

EPS = 1e-5  # nn.LayerNorm default


def _layernorm(x, gamma, beta):
    mean = jnp.mean(x, axis=-1, keepdims=True)
    var = jnp.mean((x - mean) ** 2, axis=-1, keepdims=True)
    return (x - mean) * lax.rsqrt(var + EPS) * gamma + beta


def transformer_block_kernel(
    x_ref,                            # (BB, T, C)   f32
    bias_ref,                         # (T, T)       f32 additive mask bias
    wqkv_ref,                         # (C, 3*H*hs)  bf16 fused QKV slab (Q pre-scaled)
    wproj_ref, bproj_ref,             # (H*hs, C) bf16, (1, C) f32
    ln1g_ref, ln1b_ref,               # (1, C) f32
    ln2g_ref, ln2b_ref,               # (1, C) f32
    w1_ref, b1_ref,                   # (C, F) bf16, (1, F) f32
    w2_ref, b2_ref,                   # (F, C) bf16, (1, C) f32
    out_ref,                          # (BB, T, C)   f32
    *, num_heads, head_size,
):
    BB, T, C = x_ref.shape
    H, hs = num_heads, head_size
    HH = H * hs
    BT = BB * T

    x = x_ref[...].reshape(BT, C)                     # fold batch into rows

    # ---------- self-attention on ln1(x) ----------
    h1 = _layernorm(x, ln1g_ref[...], ln1b_ref[...])

    # one lane-dense fused projection for all heads' Q, K, V (Q already scaled)
    qkv = jnp.dot(h1.astype(jnp.bfloat16), wqkv_ref[...],
                  preferred_element_type=jnp.float32)  # (BT, 3*HH) f32
    qkv = qkv.reshape(BB, T, 3 * HH)

    bias = jnp.broadcast_to(bias_ref[...], (BB, T, T))  # hoisted out of head loop
    wproj = wproj_ref[...]                               # (HH, C) bf16, load once

    head_out = None
    for h in range(H):                                  # H is small: static unroll
        q = qkv[:, :, h * hs:(h + 1) * hs].astype(jnp.bfloat16)
        k = qkv[:, :, HH + h * hs: HH + (h + 1) * hs].astype(jnp.bfloat16)
        v = qkv[:, :, 2 * HH + h * hs: 2 * HH + (h + 1) * hs].astype(jnp.bfloat16)

        # batched scores, contracting head dim -- no explicit transpose
        att = jnp.einsum("bqd,bkd->bqk", q, k,
                         preferred_element_type=jnp.float32)   # (BB, T, T)
        att = att + bias
        att = att - jnp.max(att, axis=-1, keepdims=True)
        p = jnp.exp(att)
        p = p * pl.reciprocal(jnp.sum(p, axis=-1, keepdims=True), approx=True)

        o = jnp.einsum("bqk,bkd->bqd", p.astype(jnp.bfloat16), v,
                       preferred_element_type=jnp.float32)     # (BB, T, hs)
        # project this head's slice of the output weight and accumulate in
        # registers (no scratch slab, no masked partial stores)
        contrib = jnp.dot(o.reshape(BT, hs).astype(jnp.bfloat16),
                          wproj[h * hs:(h + 1) * hs, :],
                          preferred_element_type=jnp.float32)  # (BT, C)
        head_out = contrib if head_out is None else head_out + contrib

    x1 = x + head_out + bproj_ref[...]

    # ---------- feed-forward on ln2(x1) ----------
    h2 = _layernorm(x1, ln2g_ref[...], ln2b_ref[...])
    ff = jnp.dot(h2.astype(jnp.bfloat16), w1_ref[...],
                 preferred_element_type=jnp.float32) + b1_ref[...]
    ff = jnp.maximum(ff, 0.0)
    ff = jnp.dot(ff.astype(jnp.bfloat16), w2_ref[...],
                 preferred_element_type=jnp.float32) + b2_ref[...]

    out_ref[...] = (x1 + ff).reshape(BB, T, C)


def arithmetic_transformer_block(x, mask, params, *, num_heads, head_size):
    B, T, C = x.shape
    H, hs = num_heads, head_size
    HH = H * hs
    F_dim = params["w1"].shape[1]
    scale = jnp.float32(head_size ** -0.5)

    # Fold as many batches as reasonable into one grid step (bigger row tiles,
    # fewer ~0.35us grid-step overheads); split only if B*T gets large so that
    # multiple "parallel" steps remain available for v7x's 2 TensorCores.
    BB = B
    if B * T > 1024:
        BB = max(1, 1024 // T)
        while B % BB:
            BB -= 1
    grid = (B // BB,)

    # Fused, lane-dense QKV weight slab (C, 3*H*hs) in bf16 for the MXU.
    # Attention scale folded into the Q columns (exact at these sizes).
    to_slab = lambda w: jnp.transpose(w, (1, 0, 2)).reshape(C, HH)  # (H,C,hs)->(C,H*hs)
    wqkv = jnp.concatenate(
        [to_slab(params["wq"]) * scale, to_slab(params["wk"]), to_slab(params["wv"])],
        axis=1).astype(jnp.bfloat16)
    wproj = params["wproj"].astype(jnp.bfloat16)
    w1 = params["w1"].astype(jnp.bfloat16)
    w2 = params["w2"].astype(jnp.bfloat16)

    # Additive mask bias computed once (replaces per-head cmp/select; avoids
    # -inf - -inf NaN for fully-masked rows).
    mask_bias = jnp.where(mask == 0.0, jnp.float32(-1e30), jnp.float32(0.0))

    const = lambda shape: pl.BlockSpec(shape, lambda i: tuple(0 for _ in shape))

    kernel = functools.partial(
        transformer_block_kernel, num_heads=H, head_size=hs)

    return pl.pallas_call(
        kernel,
        out_shape=jax.ShapeDtypeStruct((B, T, C), jnp.float32),
        grid=grid,
        in_specs=[
            pl.BlockSpec((BB, T, C), lambda i: (i, 0, 0)),   # x
            const((T, T)),                                   # additive mask bias
            const((C, 3 * HH)),                              # wqkv (bf16)
            const((HH, C)), const((1, C)),                   # wproj, bproj
            const((1, C)), const((1, C)),                    # ln1 g, b
            const((1, C)), const((1, C)),                    # ln2 g, b
            const((C, F_dim)), const((1, F_dim)),            # w1, b1
            const((F_dim, C)), const((1, C)),                # w2, b2
        ],
        out_specs=pl.BlockSpec((BB, T, C), lambda i: (i, 0, 0)),
        compiler_params=pltpu.CompilerParams(
            dimension_semantics=("parallel",),
            vmem_limit_bytes=32 * 1024 * 1024),
    )(
        x, mask_bias, wqkv,
        wproj, params["bproj"],
        params["ln1_g"], params["ln1_b"],
        params["ln2_g"], params["ln2_b"],
        w1, params["b1"],
        w2, params["b2"],
    )


# ---- pure-JAX fp32 reference (eval-mode PyTorch semantics) ----
def reference_block(x, mask, params, *, num_heads, head_size):
    scale = head_size ** (-0.5)
    h1 = _layernorm(x, params["ln1_g"], params["ln1_b"])
    outs = []
    for h in range(num_heads):
        q = h1 @ params["wq"][h]
        k = h1 @ params["wk"][h]
        v = h1 @ params["wv"][h]
        att = jnp.einsum("btd,bsd->bts", q, k) * scale
        att = jnp.where(mask[None] == 0.0, -jnp.inf, att)
        att = jax.nn.softmax(att, axis=-1)
        outs.append(jnp.einsum("bts,bsd->btd", att, v))
    cat = jnp.concatenate(outs, axis=-1)
    x1 = x + (cat @ params["wproj"] + params["bproj"])
    h2 = _layernorm(x1, params["ln2_g"], params["ln2_b"])
    ff = jnp.maximum(h2 @ params["w1"] + params["b1"], 0.0) @ params["w2"] + params["b2"]
    return x1 + ff


def init_params(key, embed_size, num_heads, head_size, ff_dim):
    ks = jax.random.split(key, 10)
    s = 0.1
    return {
        "wq": s * jax.random.normal(ks[0], (num_heads, embed_size, head_size), jnp.float32),
        "wk": s * jax.random.normal(ks[1], (num_heads, embed_size, head_size), jnp.float32),
        "wv": s * jax.random.normal(ks[2], (num_heads, embed_size, head_size), jnp.float32),
        "wproj": s * jax.random.normal(ks[3], (num_heads * head_size, embed_size), jnp.float32),
        "bproj": s * jax.random.normal(ks[4], (1, embed_size), jnp.float32),
        "ln1_g": jnp.ones((1, embed_size), jnp.float32),
        "ln1_b": jnp.zeros((1, embed_size), jnp.float32),
        "ln2_g": jnp.ones((1, embed_size), jnp.float32),
        "ln2_b": jnp.zeros((1, embed_size), jnp.float32),
        "w1": s * jax.random.normal(ks[5], (embed_size, ff_dim), jnp.float32),
        "b1": s * jax.random.normal(ks[6], (1, ff_dim), jnp.float32),
        "w2": s * jax.random.normal(ks[7], (ff_dim, embed_size), jnp.float32),
        "b2": s * jax.random.normal(ks[8], (1, embed_size), jnp.float32),
    }


if __name__ == "__main__":
    # TODO(synk): nn.Dropout layers are identity here (eval-mode semantics).
    B, T = 2, 8
    embed_size, num_heads, head_size, ff_dim = 32, 2, 16, 64

    key = jax.random.PRNGKey(0)
    kx, kp = jax.random.split(key)
    x = jax.random.normal(kx, (B, T, embed_size), jnp.float32)
    # causal mask: 1.0 = keep, 0.0 = masked (matches masked_fill(mask == 0, -inf))
    mask = jnp.tril(jnp.ones((T, T), jnp.float32))

    params = init_params(kp, embed_size, num_heads, head_size, ff_dim)

    out = arithmetic_transformer_block(
        x, mask, params, num_heads=num_heads, head_size=head_size)
    out = jax.block_until_ready(out)

    ref = reference_block(x, mask, params, num_heads=num_heads, head_size=head_size)
    assert out.shape == (B, T, embed_size)
    # bf16 MXU operands + approx softmax reciprocal vs full-f32 reference:
    # allow a few % tolerance.
    assert jnp.allclose(out, ref, atol=5e-2, rtol=5e-2), "mismatch vs JAX reference"

    print("KERNEL_OK")
</pallas_src>

<mosaic_0001>
module attributes {stable_mosaic.version = 11 : i64} {
  func.func @transformer_block_kernel(%arg0: i32, %arg1: memref<2x8x32xf32, #tpu.memory_space<vmem>>, %arg2: memref<8x8xf32, #tpu.memory_space<vmem>>, %arg3: memref<32x96xbf16, #tpu.memory_space<vmem>>, %arg4: memref<32x32xbf16, #tpu.memory_space<vmem>>, %arg5: memref<1x32xf32, #tpu.memory_space<vmem>>, %arg6: memref<1x32xf32, #tpu.memory_space<vmem>>, %arg7: memref<1x32xf32, #tpu.memory_space<vmem>>, %arg8: memref<1x32xf32, #tpu.memory_space<vmem>>, %arg9: memref<1x32xf32, #tpu.memory_space<vmem>>, %arg10: memref<32x64xbf16, #tpu.memory_space<vmem>>, %arg11: memref<1x64xf32, #tpu.memory_space<vmem>>, %arg12: memref<64x32xbf16, #tpu.memory_space<vmem>>, %arg13: memref<1x32xf32, #tpu.memory_space<vmem>>, %arg14: memref<2x8x32xf32, #tpu.memory_space<vmem>>) attributes {dimension_semantics = [#tpu.dimension_semantics<parallel>], iteration_bounds = array<i64: 1>, scalar_prefetch = 0 : i64, scratch_operands = 0 : i64, tpu.core_type = #tpu.core_type<tc>, window_params = [{transform_indices = @transform_0, window_bounds = array<i64: 2, 8, 32>}, {pipeline_mode = #tpu.pipeline_mode<synchronous>, transform_indices = @transform_1, window_bounds = array<i64: 8, 8>}, {pipeline_mode = #tpu.pipeline_mode<synchronous>, transform_indices = @transform_2, window_bounds = array<i64: 32, 96>}, {pipeline_mode = #tpu.pipeline_mode<synchronous>, transform_indices = @transform_3, window_bounds = array<i64: 32, 32>}, {pipeline_mode = #tpu.pipeline_mode<synchronous>, transform_indices = @transform_4, window_bounds = array<i64: 1, 32>}, {pipeline_mode = #tpu.pipeline_mode<synchronous>, transform_indices = @transform_5, window_bounds = array<i64: 1, 32>}, {pipeline_mode = #tpu.pipeline_mode<synchronous>, transform_indices = @transform_6, window_bounds = array<i64: 1, 32>}, {pipeline_mode = #tpu.pipeline_mode<synchronous>, transform_indices = @transform_7, window_bounds = array<i64: 1, 32>}, {pipeline_mode = #tpu.pipeline_mode<synchronous>, transform_indices = @transform_8, window_bounds = array<i64: 1, 32>}, {pipeline_mode = #tpu.pipeline_mode<synchronous>, transform_indices = @transform_9, window_bounds = array<i64: 32, 64>}, {pipeline_mode = #tpu.pipeline_mode<synchronous>, transform_indices = @transform_10, window_bounds = array<i64: 1, 64>}, {pipeline_mode = #tpu.pipeline_mode<synchronous>, transform_indices = @transform_11, window_bounds = array<i64: 64, 32>}, {pipeline_mode = #tpu.pipeline_mode<synchronous>, transform_indices = @transform_12, window_bounds = array<i64: 1, 32>}, {transform_indices = @transform_13, window_bounds = array<i64: 2, 8, 32>}]} {
    %c0 = arith.constant 0 : index
    %c0_0 = arith.constant 0 : index
    %c0_1 = arith.constant 0 : index
    %0 = vector.load %arg1[%c0, %c0_0, %c0_1] : memref<2x8x32xf32, #tpu.memory_space<vmem>>, vector<2x8x32xf32>
    %1 = vector.shape_cast %0 : vector<2x8x32xf32> to vector<16x32xf32>
    %c0_2 = arith.constant 0 : index
    %c0_3 = arith.constant 0 : index
    %2 = vector.load %arg6[%c0_2, %c0_3] : memref<1x32xf32, #tpu.memory_space<vmem>>, vector<1x32xf32>
    %c0_4 = arith.constant 0 : index
    %c0_5 = arith.constant 0 : index
    %3 = vector.load %arg7[%c0_4, %c0_5] : memref<1x32xf32, #tpu.memory_space<vmem>>, vector<1x32xf32>
    %cst = arith.constant dense<0.000000e+00> : vector<16xf32>
    %4 = vector.multi_reduction <add>, %1, %cst [1] : vector<16x32xf32> to vector<16xf32>
    %5 = vector.shape_cast %4 : vector<16xf32> to vector<16x1xf32>
    %cst_6 = arith.constant 3.200000e+01 : f32
    %6 = vector.broadcast %cst_6 : f32 to vector<16x1xf32>
    %7 = arith.divf %5, %6 : vector<16x1xf32>
    %8 = vector.broadcast %7 : vector<16x1xf32> to vector<16x32xf32>
    %9 = arith.subf %1, %8 : vector<16x32xf32>
    %10 = arith.mulf %9, %9 : vector<16x32xf32>
    %cst_7 = arith.constant dense<0.000000e+00> : vector<16xf32>
    %11 = vector.multi_reduction <add>, %10, %cst_7 [1] : vector<16x32xf32> to vector<16xf32>
    %12 = vector.shape_cast %11 : vector<16xf32> to vector<16x1xf32>
    %cst_8 = arith.constant 3.200000e+01 : f32
    %13 = vector.broadcast %cst_8 : f32 to vector<16x1xf32>
    %14 = arith.divf %12, %13 : vector<16x1xf32>
    %15 = vector.broadcast %7 : vector<16x1xf32> to vector<16x32xf32>
    %16 = arith.subf %1, %15 : vector<16x32xf32>
    %cst_9 = arith.constant 9.99999974E-6 : f32
    %17 = vector.broadcast %cst_9 : f32 to vector<16x1xf32>
    %18 = arith.addf %14, %17 : vector<16x1xf32>
    %19 = math.rsqrt %18 : vector<16x1xf32>
    %20 = vector.broadcast %19 : vector<16x1xf32> to vector<16x32xf32>
    %21 = arith.mulf %16, %20 : vector<16x32xf32>
    %22 = vector.broadcast %2 : vector<1x32xf32> to vector<16x32xf32>
    %23 = arith.mulf %21, %22 : vector<16x32xf32>
    %24 = vector.broadcast %3 : vector<1x32xf32> to vector<16x32xf32>
    %25 = arith.addf %23, %24 : vector<16x32xf32>
    %26 = arith.truncf %25 : vector<16x32xf32> to vector<16x32xbf16>
    %c0_10 = arith.constant 0 : index
    %c0_11 = arith.constant 0 : index
    %27 = vector.load %arg3[%c0_10, %c0_11] : memref<32x96xbf16, #tpu.memory_space<vmem>>, vector<32x96xbf16>
    %cst_12 = arith.constant dense<0.000000e+00> : vector<16x96xf32>
    %28 = tpu.matmul %26, %27, %cst_12 {dimension_numbers = #tpu.dot_dimension_numbers<[1], [0], [0], [1], [0, 0, 1, 1], [], []>} : vector<16x32xbf16>, vector<32x96xbf16>, vector<16x96xf32> -> vector<16x96xf32>
    %29 = vector.shape_cast %28 : vector<16x96xf32> to vector<2x8x96xf32>
    %c0_13 = arith.constant 0 : index
    %c0_14 = arith.constant 0 : index
    %30 = vector.load %arg2[%c0_13, %c0_14] : memref<8x8xf32, #tpu.memory_space<vmem>>, vector<8x8xf32>
    %31 = vector.shape_cast %30 : vector<8x8xf32> to vector<1x8x8xf32>
    %32 = vector.broadcast %31 : vector<1x8x8xf32> to vector<2x8x8xf32>
    %c0_15 = arith.constant 0 : index
    %c0_16 = arith.constant 0 : index
    %33 = vector.load %arg4[%c0_15, %c0_16] : memref<32x32xbf16, #tpu.memory_space<vmem>>, vector<32x32xbf16>
    %34 = vector.extract_strided_slice %29 {offsets = [0, 0, 0], sizes = [2, 8, 16], strides = [1, 1, 1]} : vector<2x8x96xf32> to vector<2x8x16xf32>
    %35 = arith.truncf %34 : vector<2x8x16xf32> to vector<2x8x16xbf16>
    %36 = vector.extract_strided_slice %29 {offsets = [0, 0, 32], sizes = [2, 8, 16], strides = [1, 1, 1]} : vector<2x8x96xf32> to vector<2x8x16xf32>
    %37 = arith.truncf %36 : vector<2x8x16xf32> to vector<2x8x16xbf16>
    %38 = vector.extract_strided_slice %29 {offsets = [0, 0, 64], sizes = [2, 8, 16], strides = [1, 1, 1]} : vector<2x8x96xf32> to vector<2x8x16xf32>
    %39 = arith.truncf %38 : vector<2x8x16xf32> to vector<2x8x16xbf16>
    "tpu.trace_start"() <{level = 10 : i32, message = "bqd,bkd->bqk"}> : () -> ()
    %cst_17 = arith.constant dense<0.000000e+00> : vector<2x8x8xf32>
    %40 = tpu.matmul %35, %37, %cst_17 {dimension_numbers = #tpu.dot_dimension_numbers<[2], [2], [1], [1], [0, 0, 0, 1, 1, 1], [0], [0]>} : vector<2x8x16xbf16>, vector<2x8x16xbf16>, vector<2x8x8xf32> -> vector<2x8x8xf32>
    "tpu.trace_stop"() : () -> ()
    %41 = arith.addf %40, %32 : vector<2x8x8xf32>
    %cst_18 = arith.constant dense<0xFF800000> : vector<2x8xf32>
    %42 = vector.multi_reduction <maximumf>, %41, %cst_18 [2] : vector<2x8x8xf32> to vector<2x8xf32>
    %43 = vector.shape_cast %42 : vector<2x8xf32> to vector<2x8x1xf32>
    %44 = vector.broadcast %43 : vector<2x8x1xf32> to vector<2x8x8xf32>
    %45 = arith.subf %41, %44 : vector<2x8x8xf32>
    %46 = math.exp %45 : vector<2x8x8xf32>
    %cst_19 = arith.constant dense<0.000000e+00> : vector<2x8xf32>
    %47 = vector.multi_reduction <add>, %46, %cst_19 [2] : vector<2x8x8xf32> to vector<2x8xf32>
    %48 = vector.shape_cast %47 : vector<2x8xf32> to vector<2x8x1xf32>
    %49 = tpu.reciprocal %48 {approx = true} : vector<2x8x1xf32> -> vector<2x8x1xf32>
    %50 = vector.broadcast %49 : vector<2x8x1xf32> to vector<2x8x8xf32>
    %51 = arith.mulf %46, %50 : vector<2x8x8xf32>
    %52 = arith.truncf %51 : vector<2x8x8xf32> to vector<2x8x8xbf16>
    "tpu.trace_start"() <{level = 10 : i32, message = "bqk,bkd->bqd"}> : () -> ()
    %cst_20 = arith.constant dense<0.000000e+00> : vector<2x8x16xf32>
    %53 = tpu.matmul %52, %39, %cst_20 {dimension_numbers = #tpu.dot_dimension_numbers<[2], [1], [1], [2], [0, 0, 0, 1, 1, 2], [0], [0]>} : vector<2x8x8xbf16>, vector<2x8x16xbf16>, vector<2x8x16xf32> -> vector<2x8x16xf32>
    "tpu.trace_stop"() : () -> ()
    %54 = vector.shape_cast %53 : vector<2x8x16xf32> to vector<16x16xf32>
    %55 = arith.truncf %54 : vector<16x16xf32> to vector<16x16xbf16>
    %56 = vector.extract_strided_slice %33 {offsets = [0, 0], sizes = [16, 32], strides = [1, 1]} : vector<32x32xbf16> to vector<16x32xbf16>
    %cst_21 = arith.constant dense<0.000000e+00> : vector<16x32xf32>
    %57 = tpu.matmul %55, %56, %cst_21 {dimension_numbers = #tpu.dot_dimension_numbers<[1], [0], [0], [1], [0, 0, 1, 1], [], []>} : vector<16x16xbf16>, vector<16x32xbf16>, vector<16x32xf32> -> vector<16x32xf32>
    %58 = vector.extract_strided_slice %29 {offsets = [0, 0, 16], sizes = [2, 8, 16], strides = [1, 1, 1]} : vector<2x8x96xf32> to vector<2x8x16xf32>
    %59 = arith.truncf %58 : vector<2x8x16xf32> to vector<2x8x16xbf16>
    %60 = vector.extract_strided_slice %29 {offsets = [0, 0, 48], sizes = [2, 8, 16], strides = [1, 1, 1]} : vector<2x8x96xf32> to vector<2x8x16xf32>
    %61 = arith.truncf %60 : vector<2x8x16xf32> to vector<2x8x16xbf16>
    %62 = vector.extract_strided_slice %29 {offsets = [0, 0, 80], sizes = [2, 8, 16], strides = [1, 1, 1]} : vector<2x8x96xf32> to vector<2x8x16xf32>
    %63 = arith.truncf %62 : vector<2x8x16xf32> to vector<2x8x16xbf16>
    "tpu.trace_start"() <{level = 10 : i32, message = "bqd,bkd->bqk"}> : () -> ()
    %cst_22 = arith.constant dense<0.000000e+00> : vector<2x8x8xf32>
    %64 = tpu.matmul %59, %61, %cst_22 {dimension_numbers = #tpu.dot_dimension_numbers<[2], [2], [1], [1], [0, 0, 0, 1, 1, 1], [0], [0]>} : vector<2x8x16xbf16>, vector<2x8x16xbf16>, vector<2x8x8xf32> -> vector<2x8x8xf32>
    "tpu.trace_stop"() : () -> ()
    %65 = arith.addf %64, %32 : vector<2x8x8xf32>
    %cst_23 = arith.constant dense<0xFF800000> : vector<2x8xf32>
    %66 = vector.multi_reduction <maximumf>, %65, %cst_23 [2] : vector<2x8x8xf32> to vector<2x8xf32>
    %67 = vector.shape_cast %66 : vector<2x8xf32> to vector<2x8x1xf32>
    %68 = vector.broadcast %67 : vector<2x8x1xf32> to vector<2x8x8xf32>
    %69 = arith.subf %65, %68 : vector<2x8x8xf32>
    %70 = math.exp %69 : vector<2x8x8xf32>
    %cst_24 = arith.constant dense<0.000000e+00> : vector<2x8xf32>
    %71 = vector.multi_reduction <add>, %70, %cst_24 [2] : vector<2x8x8xf32> to vector<2x8xf32>
    %72 = vector.shape_cast %71 : vector<2x8xf32> to vector<2x8x1xf32>
    %73 = tpu.reciprocal %72 {approx = true} : vector<2x8x1xf32> -> vector<2x8x1xf32>
    %74 = vector.broadcast %73 : vector<2x8x1xf32> to vector<2x8x8xf32>
    %75 = arith.mulf %70, %74 : vector<2x8x8xf32>
    %76 = arith.truncf %75 : vector<2x8x8xf32> to vector<2x8x8xbf16>
    "tpu.trace_start"() <{level = 10 : i32, message = "bqk,bkd->bqd"}> : () -> ()
    %cst_25 = arith.constant dense<0.000000e+00> : vector<2x8x16xf32>
    %77 = tpu.matmul %76, %63, %cst_25 {dimension_numbers = #tpu.dot_dimension_numbers<[2], [1], [1], [2], [0, 0, 0, 1, 1, 2], [0], [0]>} : vector<2x8x8xbf16>, vector<2x8x16xbf16>, vector<2x8x16xf32> -> vector<2x8x16xf32>
    "tpu.trace_stop"() : () -> ()
    %78 = vector.shape_cast %77 : vector<2x8x16xf32> to vector<16x16xf32>
    %79 = arith.truncf %78 : vector<16x16xf32> to vector<16x16xbf16>
    %80 = vector.extract_strided_slice %33 {offsets = [16, 0], sizes = [16, 32], strides = [1, 1]} : vector<32x32xbf16> to vector<16x32xbf16>
    %cst_26 = arith.constant dense<0.000000e+00> : vector<16x32xf32>
    %81 = tpu.matmul %79, %80, %cst_26 {dimension_numbers = #tpu.dot_dimension_numbers<[1], [0], [0], [1], [0, 0, 1, 1], [], []>} : vector<16x16xbf16>, vector<16x32xbf16>, vector<16x32xf32> -> vector<16x32xf32>
    %82 = arith.addf %57, %81 : vector<16x32xf32>
    %83 = arith.addf %1, %82 : vector<16x32xf32>
    %c0_27 = arith.constant 0 : index
    %c0_28 = arith.constant 0 : index
    %84 = vector.load %arg5[%c0_27, %c0_28] : memref<1x32xf32, #tpu.memory_space<vmem>>, vector<1x32xf32>
    %85 = vector.broadcast %84 : vector<1x32xf32> to vector<16x32xf32>
    %86 = arith.addf %83, %85 : vector<16x32xf32>
    %c0_29 = arith.constant 0 : index
    %c0_30 = arith.constant 0 : index
    %87 = vector.load %arg8[%c0_29, %c0_30] : memref<1x32xf32, #tpu.memory_space<vmem>>, vector<1x32xf32>
    %c0_31 = arith.constant 0 : index
    %c0_32 = arith.constant 0 : index
    %88 = vector.load %arg9[%c0_31, %c0_32] : memref<1x32xf32, #tpu.memory_space<vmem>>, vector<1x32xf32>
    %cst_33 = arith.constant dense<0.000000e+00> : vector<16xf32>
    %89 = vector.multi_reduction <add>, %86, %cst_33 [1] : vector<16x32xf32> to vector<16xf32>
    %90 = vector.shape_cast %89 : vector<16xf32> to vector<16x1xf32>
    %cst_34 = arith.constant 3.200000e+01 : f32
    %91 = vector.broadcast %cst_34 : f32 to vector<16x1xf32>
    %92 = arith.divf %90, %91 : vector<16x1xf32>
    %93 = vector.broadcast %92 : vector<16x1xf32> to vector<16x32xf32>
    %94 = arith.subf %86, %93 : vector<16x32xf32>
    %95 = arith.mulf %94, %94 : vector<16x32xf32>
    %cst_35 = arith.constant dense<0.000000e+00> : vector<16xf32>
    %96 = vector.multi_reduction <add>, %95, %cst_35 [1] : vector<16x32xf32> to vector<16xf32>
    %97 = vector.shape_cast %96 : vector<16xf32> to vector<16x1xf32>
    %cst_36 = arith.constant 3.200000e+01 : f32
    %98 = vector.broadcast %cst_36 : f32 to vector<16x1xf32>
    %99 = arith.divf %97, %98 : vector<16x1xf32>
    %100 = vector.broadcast %92 : vector<16x1xf32> to vector<16x32xf32>
    %101 = arith.subf %86, %100 : vector<16x32xf32>
    %cst_37 = arith.constant 9.99999974E-6 : f32
    %102 = vector.broadcast %cst_37 : f32 to vector<16x1xf32>
    %103 = arith.addf %99, %102 : vector<16x1xf32>
    %104 = math.rsqrt %103 : vector<16x1xf32>
    %105 = vector.broadcast %104 : vector<16x1xf32> to vector<16x32xf32>
    %106 = arith.mulf %101, %105 : vector<16x32xf32>
    %107 = vector.broadcast %87 : vector<1x32xf32> to vector<16x32xf32>
    %108 = arith.mulf %106, %107 : vector<16x32xf32>
    %109 = vector.broadcast %88 : vector<1x32xf32> to vector<16x32xf32>
    %110 = arith.addf %108, %109 : vector<16x32xf32>
    %111 = arith.truncf %110 : vector<16x32xf32> to vector<16x32xbf16>
    %c0_38 = arith.constant 0 : index
    %c0_39 = arith.constant 0 : index
    %112 = vector.load %arg10[%c0_38, %c0_39] : memref<32x64xbf16, #tpu.memory_space<vmem>>, vector<32x64xbf16>
    %cst_40 = arith.constant dense<0.000000e+00> : vector<16x64xf32>
    %113 = tpu.matmul %111, %112, %cst_40 {dimension_numbers = #tpu.dot_dimension_numbers<[1], [0], [0], [1], [0, 0, 1, 1], [], []>} : vector<16x32xbf16>, vector<32x64xbf16>, vector<16x64xf32> -> vector<16x64xf32>
    %c0_41 = arith.constant 0 : index
    %c0_42 = arith.constant 0 : index
    %114 = vector.load %arg11[%c0_41, %c0_42] : memref<1x64xf32, #tpu.memory_space<vmem>>, vector<1x64xf32>
    %115 = vector.broadcast %114 : vector<1x64xf32> to vector<16x64xf32>
    %116 = arith.addf %113, %115 : vector<16x64xf32>
    %cst_43 = arith.constant 0.000000e+00 : f32
    %117 = vector.broadcast %cst_43 : f32 to vector<16x64xf32>
    %118 = arith.maximumf %116, %117 : vector<16x64xf32>
    %119 = arith.truncf %118 : vector<16x64xf32> to vector<16x64xbf16>
    %c0_44 = arith.constant 0 : index
    %c0_45 = arith.constant 0 : index
    %120 = vector.load %arg12[%c0_44, %c0_45] : memref<64x32xbf16, #tpu.memory_space<vmem>>, vector<64x32xbf16>
    %cst_46 = arith.constant dense<0.000000e+00> : vector<16x32xf32>
    %121 = tpu.matmul %119, %120, %cst_46 {dimension_numbers = #tpu.dot_dimension_numbers<[1], [0], [0], [1], [0, 0, 1, 1], [], []>} : vector<16x64xbf16>, vector<64x32xbf16>, vector<16x32xf32> -> vector<16x32xf32>
    %c0_47 = arith.constant 0 : index
    %c0_48 = arith.constant 0 : index
    %122 = vector.load %arg13[%c0_47, %c0_48] : memref<1x32xf32, #tpu.memory_space<vmem>>, vector<1x32xf32>
    %123 = vector.broadcast %122 : vector<1x32xf32> to vector<16x32xf32>
    %124 = arith.addf %121, %123 : vector<16x32xf32>
    %125 = arith.addf %86, %124 : vector<16x32xf32>
    %126 = vector.shape_cast %125 : vector<16x32xf32> to vector<2x8x32xf32>
    %c0_49 = arith.constant 0 : index
    %c0_50 = arith.constant 0 : index
    %c0_51 = arith.constant 0 : index
    %127 = vector.load %arg14[%c0_49, %c0_50, %c0_51] : memref<2x8x32xf32, #tpu.memory_space<vmem>>, vector<2x8x32xf32>
    tpu.vector_store %arg14[%c0_49, %c0_50, %c0_51], %126 {strides = array<i32>} : memref<2x8x32xf32, #tpu.memory_space<vmem>>, vector<2x8x32xf32>,
    return
  }
  func.func @transform_0(%arg0: i32) -> (i32, i32, i32) {
    %c0_i32 = arith.constant 0 : i32
    %c0_i32_0 = arith.constant 0 : i32
    %c0_i32_1 = arith.constant 0 : i32
    return %arg0, %c0_i32, %c0_i32_0 : i32, i32, i32
  }
  func.func @transform_1(%arg0: i32) -> (i32, i32) {
    %c0_i32 = arith.constant 0 : i32
    %c0_i32_0 = arith.constant 0 : i32
    %c0_i32_1 = arith.constant 0 : i32
    return %c0_i32, %c0_i32_0 : i32, i32
  }
  func.func @transform_2(%arg0: i32) -> (i32, i32) {
    %c0_i32 = arith.constant 0 : i32
    %c0_i32_0 = arith.constant 0 : i32
    %c0_i32_1 = arith.constant 0 : i32
    return %c0_i32, %c0_i32_0 : i32, i32
  }
  func.func @transform_3(%arg0: i32) -> (i32, i32) {
    %c0_i32 = arith.constant 0 : i32
    %c0_i32_0 = arith.constant 0 : i32
    %c0_i32_1 = arith.constant 0 : i32
    return %c0_i32, %c0_i32_0 : i32, i32
  }
  func.func @transform_4(%arg0: i32) -> (i32, i32) {
    %c0_i32 = arith.constant 0 : i32
    %c0_i32_0 = arith.constant 0 : i32
    %c0_i32_1 = arith.constant 0 : i32
    return %c0_i32, %c0_i32_0 : i32, i32
  }
  func.func @transform_5(%arg0: i32) -> (i32, i32) {
    %c0_i32 = arith.constant 0 : i32
    %c0_i32_0 = arith.constant 0 : i32
    %c0_i32_1 = arith.constant 0 : i32
    return %c0_i32, %c0_i32_0 : i32, i32
  }
  func.func @transform_6(%arg0: i32) -> (i32, i32) {
    %c0_i32 = arith.constant 0 : i32
    %c0_i32_0 = arith.constant 0 : i32
    %c0_i32_1 = arith.constant 0 : i32
    return %c0_i32, %c0_i32_0 : i32, i32
  }
  func.func @transform_7(%arg0: i32) -> (i32, i32) {
    %c0_i32 = arith.constant 0 : i32
    %c0_i32_0 = arith.constant 0 : i32
    %c0_i32_1 = arith.constant 0 : i32
    return %c0_i32, %c0_i32_0 : i32, i32
  }
  func.func @transform_8(%arg0: i32) -> (i32, i32) {
    %c0_i32 = arith.constant 0 : i32
    %c0_i32_0 = arith.constant 0 : i32
    %c0_i32_1 = arith.constant 0 : i32
    return %c0_i32, %c0_i32_0 : i32, i32
  }
  func.func @transform_9(%arg0: i32) -> (i32, i32) {
    %c0_i32 = arith.constant 0 : i32
    %c0_i32_0 = arith.constant 0 : i32
    %c0_i32_1 = arith.constant 0 : i32
    return %c0_i32, %c0_i32_0 : i32, i32
  }
  func.func @transform_10(%arg0: i32) -> (i32, i32) {
    %c0_i32 = arith.constant 0 : i32
    %c0_i32_0 = arith.constant 0 : i32
    %c0_i32_1 = arith.constant 0 : i32
    return %c0_i32, %c0_i32_0 : i32, i32
  }
  func.func @transform_11(%arg0: i32) -> (i32, i32) {
    %c0_i32 = arith.constant 0 : i32
    %c0_i32_0 = arith.constant 0 : i32
    %c0_i32_1 = arith.constant 0 : i32
    return %c0_i32, %c0_i32_0 : i32, i32
  }
  func.func @transform_12(%arg0: i32) -> (i32, i32) {
    %c0_i32 = arith.constant 0 : i32
    %c0_i32_0 = arith.constant 0 : i32
    %c0_i32_1 = arith.constant 0 : i32
    return %c0_i32, %c0_i32_0 : i32, i32
  }
  func.func @transform_13(%arg0: i32) -> (i32, i32, i32) {
    %c0_i32 = arith.constant 0 : i32
    %c0_i32_0 = arith.constant 0 : i32
    %c0_i32_1 = arith.constant 0 : i32
    return %arg0, %c0_i32, %c0_i32_0 : i32, i32, i32
  }
}

</mosaic_0001>

<llo_original>
// kernel: tpu_custom_call.1
$region0: #{tpu_custom_call.1}
  #allocation0 [shape = 'u32[]', space=smem, size = 0x4, offset = 0x4, fixed_abs, tag = 'smem constant byte address 0x4 - core index']
  #allocation1 [shape = 'u32[144,128]{1,0:T(1,128)}', space=vmem, size = 0x12000, scoped, tag = 'internal scratch']
  %s0 = inlined_call_operand.vmem [shape: f32[2,8,32], index: 0, kind: input, shape index: {}]
  %s1 = inlined_call_operand.hbm [shape: f32[8,8], index: 1, kind: input, shape index: {}]
  %s2 = inlined_call_operand.vmem [shape: bf16[32,96], index: 2, kind: input, shape index: {}]
  %s3 = inlined_call_operand.vmem [shape: bf16[32,32], index: 3, kind: input, shape index: {}]
  %s4 = inlined_call_operand.vmem [shape: f32[1,32], index: 4, kind: input, shape index: {}]
  %s5 = inlined_call_operand.vmem [shape: f32[1,32], index: 5, kind: input, shape index: {}]
  %s6 = inlined_call_operand.hbm [shape: f32[1,32], index: 6, kind: input, shape index: {}]
  %s7 = inlined_call_operand.hbm [shape: f32[1,32], index: 7, kind: input, shape index: {}]
  %s8 = inlined_call_operand.hbm [shape: f32[1,32], index: 8, kind: input, shape index: {}]
  %s9 = inlined_call_operand.vmem [shape: bf16[32,64], index: 9, kind: input, shape index: {}]
  %s10 = inlined_call_operand.vmem [shape: f32[1,64], index: 10, kind: input, shape index: {}]
  %s11 = inlined_call_operand.vmem [shape: bf16[64,32], index: 11, kind: input, shape index: {}]
  %s12 = inlined_call_operand.vmem [shape: f32[1,32], index: 12, kind: input, shape index: {}]
  %s13 = inlined_call_operand.hbm [shape: f32[2,8,32], index: 13, kind: output, shape index: {}]
  %s14 = sld [smem:[#allocation0]]
  $region78: #{tpu_custom_call.1} parent=0
    _
  %s16 = ssub.s32 1, %s14
  %s17 = scalar_select 0, %s16, %s14
  $region1: #{tpu_custom_call.1} parent=0
    #allocation2 [shape = 'u8[4096]{0}', space=vmem, size = 0x1000, scoped, tag = 'input window, operand 1, single buffered']
    #allocation3 [shape = 's32[1]{0}', space=sflag, size = 0x4, scoped, tag = 'scoped memory for tpu_custom_call.1']
    #allocation4 [shape = 's32[1]{0}', space=sflag, size = 0x4, scoped, tag = 'scoped memory for tpu_custom_call.1']
    #allocation5 [shape = 'u8[512]{0}', space=vmem, size = 0x400, scoped, tag = 'input window, operand 6, single buffered']
    #allocation6 [shape = 's32[1]{0}', space=sflag, size = 0x4, scoped, tag = 'scoped memory for tpu_custom_call.1']
    #allocation7 [shape = 'u8[512]{0}', space=vmem, size = 0x400, scoped, tag = 'input window, operand 7, single buffered']
    #allocation8 [shape = 'u8[512]{0}', space=vmem, size = 0x400, scoped, tag = 'input window, operand 8, single buffered']
    #allocation9 [shape = 's32[1]{0}', space=sflag, size = 0x4, scoped, tag = 'scoped memory for tpu_custom_call.1']
    #allocation10 [shape = 'u8[8192]{0}', space=vmem, size = 0x2000, scoped, tag = 'output window, operand 0, single buffered']
    %18 = vsyncpa [#allocation3], 0
    %19 = vsyncpa [#allocation6], 0
    %20 = vsyncpa [#allocation9], 0
    %21 = vsyncpa [#allocation4], 0
    // Predicated region
    $region2: #{tpu_custom_call.1} parent=1 // pred_check
      _
    $region3: #{tpu_custom_call.1} parent=1 // pred_check_branch
      %23 = sbr.rel (0) target = $region5
    $region4: #{tpu_custom_call.1} parent=1 // pred_region
      _
    $region5: #{tpu_custom_call.1} parent=1 // pred_fallthru
      _
    // Predicated region
    $region6: #{tpu_custom_call.1} parent=1 // pred_check
      _
    $region7: #{tpu_custom_call.1} parent=1 // pred_check_branch
      %25 = sbr.rel (0) target = $region9
    $region8: #{tpu_custom_call.1} parent=1 // pred_region
      %s27 = ssub.s32 128, 128
      %28 = vsyncadd [#allocation3], %s27
      %s30 = sshll.u32 [#allocation2], 4
      %s31 = int_to_ptr.vmem [resolvable:$true] %s30
      %33 = dma.hbm_to_vmem [thread:$0]  %s1, 128, %s31, [#allocation3]
    $region9: #{tpu_custom_call.1} parent=1 // pred_fallthru
      _
    // Predicated region
    $region10: #{tpu_custom_call.1} parent=1 // pred_check
      _
    $region11: #{tpu_custom_call.1} parent=1 // pred_check_branch
      %35 = sbr.rel (0) target = $region13
    $region12: #{tpu_custom_call.1} parent=1 // pred_region
      _
    $region13: #{tpu_custom_call.1} parent=1 // pred_fallthru
      _
    // Predicated region
    $region14: #{tpu_custom_call.1} parent=1 // pred_check
      _
    $region15: #{tpu_custom_call.1} parent=1 // pred_check_branch
      %37 = sbr.rel (0) target = $region17
    $region16: #{tpu_custom_call.1} parent=1 // pred_region
      _
    $region17: #{tpu_custom_call.1} parent=1 // pred_fallthru
      _
    // Predicated region
    $region18: #{tpu_custom_call.1} parent=1 // pred_check
      _
    $region19: #{tpu_custom_call.1} parent=1 // pred_check_branch
      %39 = sbr.rel (0) target = $region21
    $region20: #{tpu_custom_call.1} parent=1 // pred_region
      _
    $region21: #{tpu_custom_call.1} parent=1 // pred_fallthru
      _
    // Predicated region
    $region22: #{tpu_custom_call.1} parent=1 // pred_check
      _
    $region23: #{tpu_custom_call.1} parent=1 // pred_check_branch
      %41 = sbr.rel (0) target = $region25
    $region24: #{tpu_custom_call.1} parent=1 // pred_region
      _
    $region25: #{tpu_custom_call.1} parent=1 // pred_fallthru
      _
    // Predicated region
    $region26: #{tpu_custom_call.1} parent=1 // pred_check
      _
    $region27: #{tpu_custom_call.1} parent=1 // pred_check_branch
      %43 = sbr.rel (0) target = $region29
    $region28: #{tpu_custom_call.1} parent=1 // pred_region
      %s45 = ssub.s32 16, 16
      %46 = vsyncadd [#allocation6], %s45
      %s48 = sshll.u32 [#allocation5], 4
      %s49 = int_to_ptr.vmem [resolvable:$true] %s48
      %51 = dma.hbm_to_vmem [thread:$0]  %s6, 16, %s49, [#allocation6]
    $region29: #{tpu_custom_call.1} parent=1 // pred_fallthru
      _
    // Predicated region
    $region30: #{tpu_custom_call.1} parent=1 // pred_check
      _
    $region31: #{tpu_custom_call.1} parent=1 // pred_check_branch
      %53 = sbr.rel (0) target = $region33
    $region32: #{tpu_custom_call.1} parent=1 // pred_region
      %s55 = ssub.s32 16, 16
      %56 = vsyncadd [#allocation6], %s55
      %s58 = sshll.u32 [#allocation7], 4
      %s59 = int_to_ptr.vmem [resolvable:$true] %s58
      %61 = dma.hbm_to_vmem [thread:$0]  %s7, 16, %s59, [#allocation6]
    $region33: #{tpu_custom_call.1} parent=1 // pred_fallthru
      _
    // Predicated region
    $region34: #{tpu_custom_call.1} parent=1 // pred_check
      _
    $region35: #{tpu_custom_call.1} parent=1 // pred_check_branch
      %63 = sbr.rel (0) target = $region37
    $region36: #{tpu_custom_call.1} parent=1 // pred_region
      %s65 = ssub.s32 16, 16
      %66 = vsyncadd [#allocation9], %s65
      %s68 = sshll.u32 [#allocation8], 4
      %s69 = int_to_ptr.vmem [resolvable:$true] %s68
      %71 = dma.hbm_to_vmem [thread:$0]  %s8, 16, %s69, [#allocation9]
    $region37: #{tpu_custom_call.1} parent=1 // pred_fallthru
      _
    // Predicated region
    $region38: #{tpu_custom_call.1} parent=1 // pred_check
      _
    $region39: #{tpu_custom_call.1} parent=1 // pred_check_branch
      %73 = sbr.rel (0) target = $region41
    $region40: #{tpu_custom_call.1} parent=1 // pred_region
      _
    $region41: #{tpu_custom_call.1} parent=1 // pred_fallthru
      _
    // Predicated region
    $region42: #{tpu_custom_call.1} parent=1 // pred_check
      _
    $region43: #{tpu_custom_call.1} parent=1 // pred_check_branch
      %75 = sbr.rel (0) target = $region45
    $region44: #{tpu_custom_call.1} parent=1 // pred_region
      _
    $region45: #{tpu_custom_call.1} parent=1 // pred_fallthru
      _
    // Predicated region
    $region46: #{tpu_custom_call.1} parent=1 // pred_check
      _
    $region47: #{tpu_custom_call.1} parent=1 // pred_check_branch
      %77 = sbr.rel (0) target = $region49
    $region48: #{tpu_custom_call.1} parent=1 // pred_region
      _
    $region49: #{tpu_custom_call.1} parent=1 // pred_fallthru
      _
    // Predicated region
    $region50: #{tpu_custom_call.1} parent=1 // pred_check
      _
    $region51: #{tpu_custom_call.1} parent=1 // pred_check_branch
      %79 = sbr.rel (0) target = $region53
    $region52: #{tpu_custom_call.1} parent=1 // pred_region
      _
    $region53: #{tpu_custom_call.1} parent=1 // pred_fallthru
      _
    // Predicated region
    $region54: #{tpu_custom_call.1} parent=1 // pred_check
      _
    $region55: #{tpu_custom_call.1} parent=1 // pred_check_branch
      %81 = sbr.rel (0) target = $region57
    $region56: #{tpu_custom_call.1} parent=1 // pred_region
      %82 = dma.done [#allocation3], 128
    $region57: #{tpu_custom_call.1} parent=1 // pred_fallthru
      _
    // Predicated region
    $region58: #{tpu_custom_call.1} parent=1 // pred_check
      _
    $region59: #{tpu_custom_call.1} parent=1 // pred_check_branch
      %84 = sbr.rel (0) target = $region61
    $region60: #{tpu_custom_call.1} parent=1 // pred_region
      %85 = dma.done [#allocation6], 16
    $region61: #{tpu_custom_call.1} parent=1 // pred_fallthru
      _
    // Predicated region
    $region62: #{tpu_custom_call.1} parent=1 // pred_check
      _
    $region63: #{tpu_custom_call.1} parent=1 // pred_check_branch
      %87 = sbr.rel (0) target = $region65
    $region64: #{tpu_custom_call.1} parent=1 // pred_region
      %88 = dma.done [#allocation6], 16
    $region65: #{tpu_custom_call.1} parent=1 // pred_fallthru
      _
    // Predicated region
    $region66: #{tpu_custom_call.1} parent=1 // pred_check
      _
    $region67: #{tpu_custom_call.1} parent=1 // pred_check_branch
      %90 = sbr.rel (0) target = $region69
    $region68: #{tpu_custom_call.1} parent=1 // pred_region
      %91 = dma.done [#allocation9], 16
    $region69: #{tpu_custom_call.1} parent=1 // pred_fallthru
      _
    %v93 = vld [vmem:[%s0] sm:$0xff]
    %v94 = vld [vmem:[%s0 + $0x8] sm:$0xff]
    %v95 = vld [vmem:[%s5] sm:$0x1]
    %v96 = vld [vmem:[#allocation5] sm:$0x1]
    %vm97 = vcmask 261120
    %v98 = vsel %vm97, %v93, 0.0
    %99 = vadd.xlane.f32.xlu0 %v98
    %v100 = vpop.xlane.xlu0 %99
    %v101 = vsel %vm97, %v94, 0.0
    %102 = vadd.xlane.f32.xlu0 %v101
    %v103 = vpop.xlane.xlu0 %102
    %v104 = vrcp.pop 32.0
    %v105 = vmul.f32 %v100, %v104
    %v106 = vmul.f32 %v103, %v104
    %v107 = vsub.f32 %v93, %v105
    %v108 = vsub.f32 %v94, %v106
    %v109 = vmul.f32 %v107, %v107
    %v110 = vmul.f32 %v108, %v108
    %v111 = vsel %vm97, %v109, 0.0
    %112 = vadd.xlane.f32.xlu0 %v111
    %v113 = vpop.xlane.xlu0 %112
    %v114 = vsel %vm97, %v110, 0.0
    %115 = vadd.xlane.f32.xlu0 %v114
    %v116 = vpop.xlane.xlu0 %115
    %v117 = vmul.f32 %v113, %v104
    %v118 = vmul.f32 %v116, %v104
    %v119 = vadd.f32 %v117, 1e-05
    %v120 = vadd.f32 %v118, 1e-05
    %v121 = vrsqrt.pop %v119
    %v122 = vrsqrt.pop %v120
    %v123 = vmul.f32 %v107, %v121
    %v124 = vmul.f32 %v108, %v122
    %v126 = vlaneseq
    %v127 = vshrl.u32 %v126, 7
    %v128 = vsub.s32 0, %v127
    %v129 = vrot.slane %v95, %v128
    %v131 = vmul.f32 %v123, %v129
    %v132 = vmul.f32 %v124, %v129
    %v134 = vlaneseq
    %v135 = vshrl.u32 %v134, 7
    %v136 = vsub.s32 0, %v135
    %v137 = vrot.slane %v96, %v136
    %v139 = vadd.f32 %v131, %v137
    %v140 = vadd.f32 %v132, %v137
    %v141 = vpack.c.bf16 %v140, %v139
    %v142 = vld [vmem:[%s2] sm:$0xf]
    %v143 = vld [vmem:[%s2 + $0x4] sm:$0xf]
    %v144 = vld [vmem:[%s2 + $0x8] sm:$0xf]
    %v145 = vld [vmem:[%s2 + $0xc] sm:$0xf]
    %v150 = vunpack.c.l.b16 %v142
    %v151 = vunpack.c.l.b16 %v143
    %v152 = vunpack.c.l.b16 %v144
    %v153 = vunpack.c.l.b16 %v145
    %v154 = vpack.c.b16 %v151, %v150
    %v155 = vpack.c.b16 %v153, %v152
    %v159 = vsel %vm97, %v141, 0
    %161 = vmatprep.subr.bf16.mxu0 0
    %162 = vmatpush1.bf16.msra.mxu0 %v154
    %163 = vmatprep.subr.bf16.mxu0 0
    %164 = vmatpush1.bf16.msra.mxu0 %v155
    %165 = vmatprep.subr.bf16.mxu0 0
    %166 = vmatpush1.bf16.msra.mxu0 0
    %167 = vmatprep.subr.bf16.mxu0 0
    %168 = vmatpush1.bf16.msra.mxu0 0
    %169 = vmatprep.subr.bf16.mxu0 0
    %170 = vmatpush1.bf16.msra.mxu0 0
    %171 = vmatprep.subr.bf16.mxu0 0
    %172 = vmatpush1.bf16.msra.mxu0 0
    %173 = vmatprep.subr.bf16.mxu0 0
    %174 = vmatpush1.bf16.msra.mxu0 0
    %175 = vmatprep.subr.bf16.mxu0 0
    %176 = vmatpush1.bf16.msra.mxu0 0
    %177 = vmatprep.subr.bf16.mxu0 0
    %178 = vmatpush1.bf16.msra.mxu0 0
    %179 = vmatprep.subr.bf16.mxu0 0
    %180 = vmatpush1.bf16.msra.mxu0 0
    %181 = vmatprep.subr.bf16.mxu0 0
    %182 = vmatpush1.bf16.msra.mxu0 0
    %183 = vmatprep.subr.bf16.mxu0 0
    %184 = vmatpush1.bf16.msra.mxu0 0
    %185 = vmatprep.subr.bf16.mxu0 0
    %186 = vmatpush1.bf16.msra.mxu0 0
    %187 = vmatprep.subr.bf16.mxu0 0
    %188 = vmatpush1.bf16.msra.mxu0 0
    %189 = vmatprep.subr.bf16.mxu0 0
    %190 = vmatpush1.bf16.msra.mxu0 0
    %191 = vmatprep.subr.bf16.mxu0 0
    %192 = vmatpush1.bf16.msra.mxu0 0
    %193 = vmatprep.mubr.bf16.mxu0 0
    %194 = vmatmul.mubr.bf16.gmra.mrb[0].mxu0 %v159
    %v195 = vpop.f32.mrb[0].mxu0
    %v196 = vadd.f32 0.0, %v195
    %v197 = vpop.f32.mrb[0].mxu0
    %v198 = vpop.f32.mrb[0].mxu0
    %v199 = vadd.f32 0.0, %v198
    %v200 = vpop.f32.mrb[0].mxu0
    %201 = vdwg.mxu0
    %v202 = vld [vmem:[#allocation2] sm:$0xff]
    %v203 = vld [vmem:[%s3] sm:$0xf]
    %v204 = vld [vmem:[%s3 + $0x4] sm:$0xf]
    %v205 = vld [vmem:[%s3 + $0x8] sm:$0xf]
    %v206 = vld [vmem:[%s3 + $0xc] sm:$0xf]
    %v207 = vpack.c.bf16 %v196, %v196
    %v208 = vpack.c.bf16 %v199, %v199
    %210 = vrot.lane.b32.xlu0 %v207, 96
    %v211 = vpop.permute.xlu0 %210
    %vm212 = vcmask 130048
    %v214 = vsel %vm212, %v207, 0
    %v217 = vsel %vm212, %v211, 0
    %219 = vmatprep.subr.bf16.mxu0 0
    %220 = vmatpush1.bf16.xpose.msra.mxu0 %v217
    %221 = vmatprep.subr.bf16.mxu0 0
    %222 = vmatpush1.bf16.xpose.msra.mxu0 0
    %223 = vmatprep.subr.bf16.mxu0 0
    %224 = vmatpush1.bf16.xpose.msra.mxu0 0
    %225 = vmatprep.subr.bf16.mxu0 0
    %226 = vmatpush1.bf16.xpose.msra.mxu0 0
    %227 = vmatprep.subr.bf16.mxu0 0
    %228 = vmatpush1.bf16.xpose.msra.mxu0 0
    %229 = vmatprep.subr.bf16.mxu0 0
    %230 = vmatpush1.bf16.xpose.msra.mxu0 0
    %231 = vmatprep.subr.bf16.mxu0 0
    %232 = vmatpush1.bf16.xpose.msra.mxu0 0
    %233 = vmatprep.subr.bf16.mxu0 0
    %234 = vmatpush1.bf16.xpose.msra.mxu0 0
    %235 = vmatprep.subr.bf16.mxu0 0
    %236 = vmatpush1.bf16.xpose.msra.mxu0 0
    %237 = vmatprep.subr.bf16.mxu0 0
    %238 = vmatpush1.bf16.xpose.msra.mxu0 0
    %239 = vmatprep.subr.bf16.mxu0 0
    %240 = vmatpush1.bf16.xpose.msra.mxu0 0
    %241 = vmatprep.subr.bf16.mxu0 0
    %242 = vmatpush1.bf16.xpose.msra.mxu0 0
    %243 = vmatprep.subr.bf16.mxu0 0
    %244 = vmatpush1.bf16.xpose.msra.mxu0 0
    %245 = vmatprep.subr.bf16.mxu0 0
    %246 = vmatpush1.bf16.xpose.msra.mxu0 0
    %247 = vmatprep.subr.bf16.mxu0 0
    %248 = vmatpush1.bf16.xpose.msra.mxu0 0
    %249 = vmatprep.subr.bf16.mxu0 0
    %250 = vmatpush1.bf16.xpose.msra.mxu0 0
    %251 = vmatprep.mubr.bf16.mxu0 0
    %252 = vmatmul.mubr.bf16.gmra.mrb[0].mxu0 %v214
    %v253 = vpop.f32.mrb[0].mxu0
    %v254 = vadd.f32 %v202, %v253
    %v255 = vpop.f32.mrb[0].mxu0
    %v256 = vpop.f32.mrb[0].mxu0
    %v257 = vpop.f32.mrb[0].mxu0
    %258 = vdwg.mxu0
    %260 = vrot.lane.b32.xlu0 %v208, 96
    %v261 = vpop.permute.xlu0 %260
    %v263 = vsel %vm212, %v208, 0
    %v266 = vsel %vm212, %v261, 0
    %268 = vmatprep.subr.bf16.mxu0 0
    %269 = vmatpush1.bf16.xpose.msra.mxu0 %v266
    %270 = vmatprep.subr.bf16.mxu0 0
    %271 = vmatpush1.bf16.xpose.msra.mxu0 0
    %272 = vmatprep.subr.bf16.mxu0 0
    %273 = vmatpush1.bf16.xpose.msra.mxu0 0
    %274 = vmatprep.subr.bf16.mxu0 0
    %275 = vmatpush1.bf16.xpose.msra.mxu0 0
    %276 = vmatprep.subr.bf16.mxu0 0
    %277 = vmatpush1.bf16.xpose.msra.mxu0 0
    %278 = vmatprep.subr.bf16.mxu0 0
    %279 = vmatpush1.bf16.xpose.msra.mxu0 0
    %280 = vmatprep.subr.bf16.mxu0 0
    %281 = vmatpush1.bf16.xpose.msra.mxu0 0
    %282 = vmatprep.subr.bf16.mxu0 0
    %283 = vmatpush1.bf16.xpose.msra.mxu0 0
    %284 = vmatprep.subr.bf16.mxu0 0
    %285 = vmatpush1.bf16.xpose.msra.mxu0 0
    %286 = vmatprep.subr.bf16.mxu0 0
    %287 = vmatpush1.bf16.xpose.msra.mxu0 0
    %288 = vmatprep.subr.bf16.mxu0 0
    %289 = vmatpush1.bf16.xpose.msra.mxu0 0
    %290 = vmatprep.subr.bf16.mxu0 0
    %291 = vmatpush1.bf16.xpose.msra.mxu0 0
    %292 = vmatprep.subr.bf16.mxu0 0
    %293 = vmatpush1.bf16.xpose.msra.mxu0 0
    %294 = vmatprep.subr.bf16.mxu0 0
    %295 = vmatpush1.bf16.xpose.msra.mxu0 0
    %296 = vmatprep.subr.bf16.mxu0 0
    %297 = vmatpush1.bf16.xpose.msra.mxu0 0
    %298 = vmatprep.subr.bf16.mxu0 0
    %299 = vmatpush1.bf16.xpose.msra.mxu0 0
    %300 = vmatprep.mubr.bf16.mxu0 0
    %301 = vmatmul.mubr.bf16.gmra.mrb[0].mxu0 %v263
    %v302 = vpop.f32.mrb[0].mxu0
    %v303 = vadd.f32 %v202, %v302
    %v304 = vpop.f32.mrb[0].mxu0
    %v305 = vpop.f32.mrb[0].mxu0
    %v306 = vpop.f32.mrb[0].mxu0
    %307 = vdwg.mxu0
    %vm308 = vcmask 64512
    %v309 = vsel %vm308, %v254, -inf
    %310 = vmax.xlane.f32.xlu0 %v309
    %v311 = vpop.xlane.xlu0 %310
    %v312 = vsel %vm308, %v303, -inf
    %313 = vmax.xlane.f32.xlu0 %v312
    %v314 = vpop.xlane.xlu0 %313
    %v315 = vsub.f32 %v254, %v311
    %v316 = vsub.f32 %v303, %v314
    %v317 = vmul.f32 %v315, 1.442695
    %v318 = vpow.pop %v317
    %v319 = vmul.f32 %v316, 1.442695
    %v320 = vpow.pop %v319
    %v321 = vsel %vm308, %v318, 0.0
    %322 = vadd.xlane.f32.xlu0 %v321
    %v323 = vpop.xlane.xlu0 %322
    %v324 = vsel %vm308, %v320, 0.0
    %325 = vadd.xlane.f32.xlu0 %v324
    %v326 = vpop.xlane.xlu0 %325
    %v327 = vrcp.pop %v323
    %v328 = vrcp.pop %v326
    %v329 = vmul.f32 %v318, %v327
    %v330 = vmul.f32 %v320, %v328
    %v331 = vpack.c.bf16 %v329, %v329
    %v332 = vpack.c.bf16 %v330, %v330
    %333 = vrot.lane.b32.xlu0 %v207, 64
    %v334 = vpop.permute.xlu0 %333
    %v336 = vsel %vm308, %v331, 0
    %vm338 = vcmask 1043456
    %v340 = vsel %vm338, %v334, 0
    %342 = vmatprep.subr.bf16.mxu0 0
    %343 = vmatpush1.bf16.msra.mxu0 %v340
    %344 = vmatprep.subr.bf16.mxu0 0
    %345 = vmatpush1.bf16.msra.mxu0 0
    %346 = vmatprep.subr.bf16.mxu0 0
    %347 = vmatpush1.bf16.msra.mxu0 0
    %348 = vmatprep.subr.bf16.mxu0 0
    %349 = vmatpush1.bf16.msra.mxu0 0
    %350 = vmatprep.subr.bf16.mxu0 0
    %351 = vmatpush1.bf16.msra.mxu0 0
    %352 = vmatprep.subr.bf16.mxu0 0
    %353 = vmatpush1.bf16.msra.mxu0 0
    %354 = vmatprep.subr.bf16.mxu0 0
    %355 = vmatpush1.bf16.msra.mxu0 0
    %356 = vmatprep.subr.bf16.mxu0 0
    %357 = vmatpush1.bf16.msra.mxu0 0
    %358 = vmatprep.subr.bf16.mxu0 0
    %359 = vmatpush1.bf16.msra.mxu0 0
    %360 = vmatprep.subr.bf16.mxu0 0
    %361 = vmatpush1.bf16.msra.mxu0 0
    %362 = vmatprep.subr.bf16.mxu0 0
    %363 = vmatpush1.bf16.msra.mxu0 0
    %364 = vmatprep.subr.bf16.mxu0 0
    %365 = vmatpush1.bf16.msra.mxu0 0
    %366 = vmatprep.subr.bf16.mxu0 0
    %367 = vmatpush1.bf16.msra.mxu0 0
    %368 = vmatprep.subr.bf16.mxu0 0
    %369 = vmatpush1.bf16.msra.mxu0 0
    %370 = vmatprep.subr.bf16.mxu0 0
    %371 = vmatpush1.bf16.msra.mxu0 0
    %372 = vmatprep.subr.bf16.mxu0 0
    %373 = vmatpush1.bf16.msra.mxu0 0
    %374 = vmatprep.mubr.bf16.mxu0 0
    %375 = vmatmul.mubr.bf16.gmra.mrb[0].mxu0 %v336
    %v376 = vpop.f32.mrb[0].mxu0
    %v377 = vadd.f32 0.0, %v376
    %v378 = vpop.f32.mrb[0].mxu0
    %v379 = vpop.f32.mrb[0].mxu0
    %v380 = vpop.f32.mrb[0].mxu0
    %381 = vdwg.mxu0
    %382 = vrot.lane.b32.xlu0 %v208, 64
    %v383 = vpop.permute.xlu0 %382
    %v385 = vsel %vm308, %v332, 0
    %v388 = vsel %vm338, %v383, 0
    %390 = vmatprep.subr.bf16.mxu0 0
    %391 = vmatpush1.bf16.msra.mxu0 %v388
    %392 = vmatprep.subr.bf16.mxu0 0
    %393 = vmatpush1.bf16.msra.mxu0 0
    %394 = vmatprep.subr.bf16.mxu0 0
    %395 = vmatpush1.bf16.msra.mxu0 0
    %396 = vmatprep.subr.bf16.mxu0 0
    %397 = vmatpush1.bf16.msra.mxu0 0
    %398 = vmatprep.subr.bf16.mxu0 0
    %399 = vmatpush1.bf16.msra.mxu0 0
    %400 = vmatprep.subr.bf16.mxu0 0
    %401 = vmatpush1.bf16.msra.mxu0 0
    %402 = vmatprep.subr.bf16.mxu0 0
    %403 = vmatpush1.bf16.msra.mxu0 0
    %404 = vmatprep.subr.bf16.mxu0 0
    %405 = vmatpush1.bf16.msra.mxu0 0
    %406 = vmatprep.subr.bf16.mxu0 0
    %407 = vmatpush1.bf16.msra.mxu0 0
    %408 = vmatprep.subr.bf16.mxu0 0
    %409 = vmatpush1.bf16.msra.mxu0 0
    %410 = vmatprep.subr.bf16.mxu0 0
    %411 = vmatpush1.bf16.msra.mxu0 0
    %412 = vmatprep.subr.bf16.mxu0 0
    %413 = vmatpush1.bf16.msra.mxu0 0
    %414 = vmatprep.subr.bf16.mxu0 0
    %415 = vmatpush1.bf16.msra.mxu0 0
    %416 = vmatprep.subr.bf16.mxu0 0
    %417 = vmatpush1.bf16.msra.mxu0 0
    %418 = vmatprep.subr.bf16.mxu0 0
    %419 = vmatpush1.bf16.msra.mxu0 0
    %420 = vmatprep.subr.bf16.mxu0 0
    %421 = vmatpush1.bf16.msra.mxu0 0
    %422 = vmatprep.mubr.bf16.mxu0 0
    %423 = vmatmul.mubr.bf16.gmra.mrb[0].mxu0 %v385
    %v424 = vpop.f32.mrb[0].mxu0
    %v425 = vadd.f32 0.0, %v424
    %v426 = vpop.f32.mrb[0].mxu0
    %v427 = vpop.f32.mrb[0].mxu0
    %v428 = vpop.f32.mrb[0].mxu0
    %429 = vdwg.mxu0
    %v430 = vpack.c.bf16 %v425, %v377
    %431 = vrot.lane.b32.xlu0 %v207, 112
    %v432 = vpop.permute.xlu0 %431
    %433 = vrot.lane.b32.xlu0 %v207, 80
    %v434 = vpop.permute.xlu0 %433
    %v436 = vsel %vm212, %v432, 0
    %v439 = vsel %vm212, %v434, 0
    %441 = vmatprep.subr.bf16.mxu0 0
    %442 = vmatpush1.bf16.xpose.msra.mxu0 %v439
    %443 = vmatprep.subr.bf16.mxu0 0
    %444 = vmatpush1.bf16.xpose.msra.mxu0 0
    %445 = vmatprep.subr.bf16.mxu0 0
    %446 = vmatpush1.bf16.xpose.msra.mxu0 0
    %447 = vmatprep.subr.bf16.mxu0 0
    %448 = vmatpush1.bf16.xpose.msra.mxu0 0
    %449 = vmatprep.subr.bf16.mxu0 0
    %450 = vmatpush1.bf16.xpose.msra.mxu0 0
    %451 = vmatprep.subr.bf16.mxu0 0
    %452 = vmatpush1.bf16.xpose.msra.mxu0 0
    %453 = vmatprep.subr.bf16.mxu0 0
    %454 = vmatpush1.bf16.xpose.msra.mxu0 0
    %455 = vmatprep.subr.bf16.mxu0 0
    %456 = vmatpush1.bf16.xpose.msra.mxu0 0
    %457 = vmatprep.subr.bf16.mxu0 0
    %458 = vmatpush1.bf16.xpose.msra.mxu0 0
    %459 = vmatprep.subr.bf16.mxu0 0
    %460 = vmatpush1.bf16.xpose.msra.mxu0 0
    %461 = vmatprep.subr.bf16.mxu0 0
    %462 = vmatpush1.bf16.xpose.msra.mxu0 0
    %463 = vmatprep.subr.bf16.mxu0 0
    %464 = vmatpush1.bf16.xpose.msra.mxu0 0
    %465 = vmatprep.subr.bf16.mxu0 0
    %466 = vmatpush1.bf16.xpose.msra.mxu0 0
    %467 = vmatprep.subr.bf16.mxu0 0
    %468 = vmatpush1.bf16.xpose.msra.mxu0 0
    %469 = vmatprep.subr.bf16.mxu0 0
    %470 = vmatpush1.bf16.xpose.msra.mxu0 0
    %471 = vmatprep.subr.bf16.mxu0 0
    %472 = vmatpush1.bf16.xpose.msra.mxu0 0
    %473 = vmatprep.mubr.bf16.mxu0 0
    %474 = vmatmul.mubr.bf16.gmra.mrb[0].mxu0 %v436
    %v475 = vpop.f32.mrb[0].mxu0
    %v476 = vadd.f32 %v202, %v475
    %v477 = vpop.f32.mrb[0].mxu0
    %v478 = vpop.f32.mrb[0].mxu0
    %v479 = vpop.f32.mrb[0].mxu0
    %480 = vdwg.mxu0
    %481 = vrot.lane.b32.xlu0 %v208, 112
    %v482 = vpop.permute.xlu0 %481
    %483 = vrot.lane.b32.xlu0 %v208, 80
    %v484 = vpop.permute.xlu0 %483
    %v486 = vsel %vm212, %v482, 0
    %v489 = vsel %vm212, %v484, 0
    %491 = vmatprep.subr.bf16.mxu0 0
    %492 = vmatpush1.bf16.xpose.msra.mxu0 %v489
    %493 = vmatprep.subr.bf16.mxu0 0
    %494 = vmatpush1.bf16.xpose.msra.mxu0 0
    %495 = vmatprep.subr.bf16.mxu0 0
    %496 = vmatpush1.bf16.xpose.msra.mxu0 0
    %497 = vmatprep.subr.bf16.mxu0 0
    %498 = vmatpush1.bf16.xpose.msra.mxu0 0
    %499 = vmatprep.subr.bf16.mxu0 0
    %500 = vmatpush1.bf16.xpose.msra.mxu0 0
    %501 = vmatprep.subr.bf16.mxu0 0
    %502 = vmatpush1.bf16.xpose.msra.mxu0 0
    %503 = vmatprep.subr.bf16.mxu0 0
    %504 = vmatpush1.bf16.xpose.msra.mxu0 0
    %505 = vmatprep.subr.bf16.mxu0 0
    %506 = vmatpush1.bf16.xpose.msra.mxu0 0
    %507 = vmatprep.subr.bf16.mxu0 0
    %508 = vmatpush1.bf16.xpose.msra.mxu0 0
    %509 = vmatprep.subr.bf16.mxu0 0
    %510 = vmatpush1.bf16.xpose.msra.mxu0 0
    %511 = vmatprep.subr.bf16.mxu0 0
    %512 = vmatpush1.bf16.xpose.msra.mxu0 0
    %513 = vmatprep.subr.bf16.mxu0 0
    %514 = vmatpush1.bf16.xpose.msra.mxu0 0
    %515 = vmatprep.subr.bf16.mxu0 0
    %516 = vmatpush1.bf16.xpose.msra.mxu0 0
    %517 = vmatprep.subr.bf16.mxu0 0
    %518 = vmatpush1.bf16.xpose.msra.mxu0 0
    %519 = vmatprep.subr.bf16.mxu0 0
    %520 = vmatpush1.bf16.xpose.msra.mxu0 0
    %521 = vmatprep.subr.bf16.mxu0 0
    %522 = vmatpush1.bf16.xpose.msra.mxu0 0
    %523 = vmatprep.mubr.bf16.mxu0 0
    %524 = vmatmul.mubr.bf16.gmra.mrb[0].mxu0 %v486
    %v525 = vpop.f32.mrb[0].mxu0
    %v526 = vadd.f32 %v202, %v525
    %v527 = vpop.f32.mrb[0].mxu0
    %v528 = vpop.f32.mrb[0].mxu0
    %v529 = vpop.f32.mrb[0].mxu0
    %530 = vdwg.mxu0
    %v531 = vsel %vm308, %v476, -inf
    %532 = vmax.xlane.f32.xlu0 %v531
    %v533 = vpop.xlane.xlu0 %532
    %v534 = vsel %vm308, %v526, -inf
    %535 = vmax.xlane.f32.xlu0 %v534
    %v536 = vpop.xlane.xlu0 %535
    %v537 = vsub.f32 %v476, %v533
    %v538 = vsub.f32 %v526, %v536
    %v539 = vmul.f32 %v537, 1.442695
    %v540 = vpow.pop %v539
    %v541 = vmul.f32 %v538, 1.442695
    %v542 = vpow.pop %v541
    %v543 = vsel %vm308, %v540, 0.0
    %544 = vadd.xlane.f32.xlu0 %v543
    %v545 = vpop.xlane.xlu0 %544
    %v546 = vsel %vm308, %v542, 0.0
    %547 = vadd.xlane.f32.xlu0 %v546
    %v548 = vpop.xlane.xlu0 %547
    %v549 = vrcp.pop %v545
    %v550 = vrcp.pop %v548
    %v551 = vmul.f32 %v540, %v549
    %v552 = vmul.f32 %v542, %v550
    %v553 = vpack.c.bf16 %v551, %v551
    %v554 = vpack.c.bf16 %v552, %v552
    %555 = vrot.lane.b32.xlu0 %v207, 48
    %v556 = vpop.permute.xlu0 %555
    %v558 = vsel %vm308, %v553, 0
    %v561 = vsel %vm338, %v556, 0
    %563 = vmatprep.subr.bf16.mxu0 0
    %564 = vmatpush1.bf16.msra.mxu0 %v561
    %565 = vmatprep.subr.bf16.mxu0 0
    %566 = vmatpush1.bf16.msra.mxu0 0
    %567 = vmatprep.subr.bf16.mxu0 0
    %568 = vmatpush1.bf16.msra.mxu0 0
    %569 = vmatprep.subr.bf16.mxu0 0
    %570 = vmatpush1.bf16.msra.mxu0 0
    %571 = vmatprep.subr.bf16.mxu0 0
    %572 = vmatpush1.bf16.msra.mxu0 0
    %573 = vmatprep.subr.bf16.mxu0 0
    %574 = vmatpush1.bf16.msra.mxu0 0
    %575 = vmatprep.subr.bf16.mxu0 0
    %576 = vmatpush1.bf16.msra.mxu0 0
    %577 = vmatprep.subr.bf16.mxu0 0
    %578 = vmatpush1.bf16.msra.mxu0 0
    %579 = vmatprep.subr.bf16.mxu0 0
    %580 = vmatpush1.bf16.msra.mxu0 0
    %581 = vmatprep.subr.bf16.mxu0 0
    %582 = vmatpush1.bf16.msra.mxu0 0
    %583 = vmatprep.subr.bf16.mxu0 0
    %584 = vmatpush1.bf16.msra.mxu0 0
    %585 = vmatprep.subr.bf16.mxu0 0
    %586 = vmatpush1.bf16.msra.mxu0 0
    %587 = vmatprep.subr.bf16.mxu0 0
    %588 = vmatpush1.bf16.msra.mxu0 0
    %589 = vmatprep.subr.bf16.mxu0 0
    %590 = vmatpush1.bf16.msra.mxu0 0
    %591 = vmatprep.subr.bf16.mxu0 0
    %592 = vmatpush1.bf16.msra.mxu0 0
    %593 = vmatprep.subr.bf16.mxu0 0
    %594 = vmatpush1.bf16.msra.mxu0 0
    %595 = vmatprep.mubr.bf16.mxu0 0
    %596 = vmatmul.mubr.bf16.gmra.mrb[0].mxu0 %v558
    %v597 = vpop.f32.mrb[0].mxu0
    %v598 = vadd.f32 0.0, %v597
    %v599 = vpop.f32.mrb[0].mxu0
    %v600 = vpop.f32.mrb[0].mxu0
    %v601 = vpop.f32.mrb[0].mxu0
    %602 = vdwg.mxu0
    %603 = vrot.lane.b32.xlu0 %v208, 48
    %v604 = vpop.permute.xlu0 %603
    %v606 = vsel %vm308, %v554, 0
    %v609 = vsel %vm338, %v604, 0
    %611 = vmatprep.subr.bf16.mxu0 0
    %612 = vmatpush1.bf16.msra.mxu0 %v609
    %613 = vmatprep.subr.bf16.mxu0 0
    %614 = vmatpush1.bf16.msra.mxu0 0
    %615 = vmatprep.subr.bf16.mxu0 0
    %616 = vmatpush1.bf16.msra.mxu0 0
    %617 = vmatprep.subr.bf16.mxu0 0
    %618 = vmatpush1.bf16.msra.mxu0 0
    %619 = vmatprep.subr.bf16.mxu0 0
    %620 = vmatpush1.bf16.msra.mxu0 0
    %621 = vmatprep.subr.bf16.mxu0 0
    %622 = vmatpush1.bf16.msra.mxu0 0
    %623 = vmatprep.subr.bf16.mxu0 0
    %624 = vmatpush1.bf16.msra.mxu0 0
    %625 = vmatprep.subr.bf16.mxu0 0
    %626 = vmatpush1.bf16.msra.mxu0 0
    %627 = vmatprep.subr.bf16.mxu0 0
    %628 = vmatpush1.bf16.msra.mxu0 0
    %629 = vmatprep.subr.bf16.mxu0 0
    %630 = vmatpush1.bf16.msra.mxu0 0
    %631 = vmatprep.subr.bf16.mxu0 0
    %632 = vmatpush1.bf16.msra.mxu0 0
    %633 = vmatprep.subr.bf16.mxu0 0
    %634 = vmatpush1.bf16.msra.mxu0 0
    %635 = vmatprep.subr.bf16.mxu0 0
    %636 = vmatpush1.bf16.msra.mxu0 0
    %637 = vmatprep.subr.bf16.mxu0 0
    %638 = vmatpush1.bf16.msra.mxu0 0
    %639 = vmatprep.subr.bf16.mxu0 0
    %640 = vmatpush1.bf16.msra.mxu0 0
    %641 = vmatprep.subr.bf16.mxu0 0
    %642 = vmatpush1.bf16.msra.mxu0 0
    %643 = vmatprep.mubr.bf16.mxu0 0
    %644 = vmatmul.mubr.bf16.gmra.mrb[0].mxu0 %v606
    %v645 = vpop.f32.mrb[0].mxu0
    %v646 = vadd.f32 0.0, %v645
    %v647 = vpop.f32.mrb[0].mxu0
    %v648 = vpop.f32.mrb[0].mxu0
    %v649 = vpop.f32.mrb[0].mxu0
    %650 = vdwg.mxu0
    %v651 = vpack.c.bf16 %v646, %v598
    %v654 = vunpack.c.l.b16 %v205
    %v655 = vunpack.c.l.b16 %v206
    %v656 = vpack.c.b16 %v655, %v654
    %v659 = vsel %vm212, %v651, 0
    %661 = vmatprep.subr.bf16.mxu0 0
    %662 = vmatpush1.bf16.msra.mxu0 %v656
    %663 = vmatprep.subr.bf16.mxu0 0
    %664 = vmatpush1.bf16.msra.mxu0 0
    %665 = vmatprep.subr.bf16.mxu0 0
    %666 = vmatpush1.bf16.msra.mxu0 0
    %667 = vmatprep.subr.bf16.mxu0 0
    %668 = vmatpush1.bf16.msra.mxu0 0
    %669 = vmatprep.subr.bf16.mxu0 0
    %670 = vmatpush1.bf16.msra.mxu0 0
    %671 = vmatprep.subr.bf16.mxu0 0
    %672 = vmatpush1.bf16.msra.mxu0 0
    %673 = vmatprep.subr.bf16.mxu0 0
    %674 = vmatpush1.bf16.msra.mxu0 0
    %675 = vmatprep.subr.bf16.mxu0 0
    %676 = vmatpush1.bf16.msra.mxu0 0
    %677 = vmatprep.subr.bf16.mxu0 0
    %678 = vmatpush1.bf16.msra.mxu0 0
    %679 = vmatprep.subr.bf16.mxu0 0
    %680 = vmatpush1.bf16.msra.mxu0 0
    %681 = vmatprep.subr.bf16.mxu0 0
    %682 = vmatpush1.bf16.msra.mxu0 0
    %683 = vmatprep.subr.bf16.mxu0 0
    %684 = vmatpush1.bf16.msra.mxu0 0
    %685 = vmatprep.subr.bf16.mxu0 0
    %686 = vmatpush1.bf16.msra.mxu0 0
    %687 = vmatprep.subr.bf16.mxu0 0
    %688 = vmatpush1.bf16.msra.mxu0 0
    %689 = vmatprep.subr.bf16.mxu0 0
    %690 = vmatpush1.bf16.msra.mxu0 0
    %691 = vmatprep.subr.bf16.mxu0 0
    %692 = vmatpush1.bf16.msra.mxu0 0
    %693 = vmatprep.mubr.bf16.mxu0 0
    %694 = vmatmul.mubr.bf16.gmra.mrb[0].mxu0 %v659
    %v695 = vpop.f32.mrb[0].mxu0
    %v696 = vadd.f32 0.0, %v695
    %v697 = vpop.f32.mrb[0].mxu0
    %v698 = vpop.f32.mrb[0].mxu0
    %v699 = vadd.f32 0.0, %v698
    %v700 = vpop.f32.mrb[0].mxu0
    %701 = vdwg.mxu0
    %v704 = vunpack.c.l.b16 %v203
    %v705 = vunpack.c.l.b16 %v204
    %v706 = vpack.c.b16 %v705, %v704
    %v709 = vsel %vm212, %v430, 0
    %711 = vmatprep.subr.bf16.mxu0 0
    %712 = vmatpush1.bf16.msra.mxu0 %v706
    %713 = vmatprep.subr.bf16.mxu0 0
    %714 = vmatpush1.bf16.msra.mxu0 0
    %715 = vmatprep.subr.bf16.mxu0 0
    %716 = vmatpush1.bf16.msra.mxu0 0
    %717 = vmatprep.subr.bf16.mxu0 0
    %718 = vmatpush1.bf16.msra.mxu0 0
    %719 = vmatprep.subr.bf16.mxu0 0
    %720 = vmatpush1.bf16.msra.mxu0 0
    %721 = vmatprep.subr.bf16.mxu0 0
    %722 = vmatpush1.bf16.msra.mxu0 0
    %723 = vmatprep.subr.bf16.mxu0 0
    %724 = vmatpush1.bf16.msra.mxu0 0
    %725 = vmatprep.subr.bf16.mxu0 0
    %726 = vmatpush1.bf16.msra.mxu0 0
    %727 = vmatprep.subr.bf16.mxu0 0
    %728 = vmatpush1.bf16.msra.mxu0 0
    %729 = vmatprep.subr.bf16.mxu0 0
    %730 = vmatpush1.bf16.msra.mxu0 0
    %731 = vmatprep.subr.bf16.mxu0 0
    %732 = vmatpush1.bf16.msra.mxu0 0
    %733 = vmatprep.subr.bf16.mxu0 0
    %734 = vmatpush1.bf16.msra.mxu0 0
    %735 = vmatprep.subr.bf16.mxu0 0
    %736 = vmatpush1.bf16.msra.mxu0 0
    %737 = vmatprep.subr.bf16.mxu0 0
    %738 = vmatpush1.bf16.msra.mxu0 0
    %739 = vmatprep.subr.bf16.mxu0 0
    %740 = vmatpush1.bf16.msra.mxu0 0
    %741 = vmatprep.subr.bf16.mxu0 0
    %742 = vmatpush1.bf16.msra.mxu0 0
    %743 = vmatprep.mubr.bf16.mxu0 0
    %744 = vmatmul.mubr.bf16.gmra.mrb[0].mxu0 %v709
    %v745 = vpop.f32.mrb[0].mxu0
    %v746 = vadd.f32 %v696, %v745
    %v747 = vpop.f32.mrb[0].mxu0
    %v748 = vpop.f32.mrb[0].mxu0
    %v749 = vadd.f32 %v699, %v748
    %v750 = vpop.f32.mrb[0].mxu0
    %751 = vdwg.mxu0
    %v752 = vadd.f32 %v93, %v746
    %v753 = vadd.f32 %v94, %v749
    %v754 = vld [vmem:[%s4] sm:$0x1]
    %v756 = vlaneseq
    %v757 = vshrl.u32 %v756, 7
    %v758 = vsub.s32 0, %v757
    %v759 = vrot.slane %v754, %v758
    %v761 = vadd.f32 %v752, %v759
    %v762 = vadd.f32 %v753, %v759
    %v763 = vld [vmem:[#allocation7] sm:$0x1]
    %v764 = vld [vmem:[#allocation8] sm:$0x1]
    %v765 = vsel %vm97, %v761, 0.0
    %766 = vadd.xlane.f32.xlu0 %v765
    %v767 = vpop.xlane.xlu0 %766
    %v768 = vsel %vm97, %v762, 0.0
    %769 = vadd.xlane.f32.xlu0 %v768
    %v770 = vpop.xlane.xlu0 %769
    %v771 = vmul.f32 %v767, %v104
    %v772 = vmul.f32 %v770, %v104
    %v773 = vsub.f32 %v761, %v771
    %v774 = vsub.f32 %v762, %v772
    %v775 = vmul.f32 %v773, %v773
    %v776 = vmul.f32 %v774, %v774
    %v777 = vsel %vm97, %v775, 0.0
    %778 = vadd.xlane.f32.xlu0 %v777
    %v779 = vpop.xlane.xlu0 %778
    %v780 = vsel %vm97, %v776, 0.0
    %781 = vadd.xlane.f32.xlu0 %v780
    %v782 = vpop.xlane.xlu0 %781
    %v783 = vmul.f32 %v779, %v104
    %v784 = vmul.f32 %v782, %v104
    %v785 = vadd.f32 %v783, 1e-05
    %v786 = vadd.f32 %v784, 1e-05
    %v787 = vrsqrt.pop %v785
    %v788 = vrsqrt.pop %v786
    %v789 = vmul.f32 %v773, %v787
    %v790 = vmul.f32 %v774, %v788
    %v792 = vlaneseq
    %v793 = vshrl.u32 %v792, 7
    %v794 = vsub.s32 0, %v793
    %v795 = vrot.slane %v763, %v794
    %v797 = vmul.f32 %v789, %v795
    %v798 = vmul.f32 %v790, %v795
    %v800 = vlaneseq
    %v801 = vshrl.u32 %v800, 7
    %v802 = vsub.s32 0, %v801
    %v803 = vrot.slane %v764, %v802
    %v805 = vadd.f32 %v797, %v803
    %v806 = vadd.f32 %v798, %v803
    %v807 = vpack.c.bf16 %v806, %v805
    %v808 = vld [vmem:[%s9] sm:$0xf]
    %v809 = vld [vmem:[%s9 + $0x4] sm:$0xf]
    %v810 = vld [vmem:[%s9 + $0x8] sm:$0xf]
    %v811 = vld [vmem:[%s9 + $0xc] sm:$0xf]
    %v812 = vld [vmem:[%s10] sm:$0x1]
    %v814 = vlaneseq
    %v815 = vshrl.u32 %v814, 7
    %v816 = vsub.s32 0, %v815
    %v817 = vrot.slane %v812, %v816
    %v823 = vunpack.c.l.b16 %v808
    %v824 = vunpack.c.l.b16 %v809
    %v825 = vunpack.c.l.b16 %v810
    %v826 = vunpack.c.l.b16 %v811
    %v827 = vpack.c.b16 %v824, %v823
    %v828 = vpack.c.b16 %v826, %v825
    %v832 = vsel %vm97, %v807, 0
    %834 = vmatprep.subr.bf16.mxu0 0
    %835 = vmatpush1.bf16.msra.mxu0 %v827
    %836 = vmatprep.subr.bf16.mxu0 0
    %837 = vmatpush1.bf16.msra.mxu0 %v828
    %838 = vmatprep.subr.bf16.mxu0 0
    %839 = vmatpush1.bf16.msra.mxu0 0
    %840 = vmatprep.subr.bf16.mxu0 0
    %841 = vmatpush1.bf16.msra.mxu0 0
    %842 = vmatprep.subr.bf16.mxu0 0
    %843 = vmatpush1.bf16.msra.mxu0 0
    %844 = vmatprep.subr.bf16.mxu0 0
    %845 = vmatpush1.bf16.msra.mxu0 0
    %846 = vmatprep.subr.bf16.mxu0 0
    %847 = vmatpush1.bf16.msra.mxu0 0
    %848 = vmatprep.subr.bf16.mxu0 0
    %849 = vmatpush1.bf16.msra.mxu0 0
    %850 = vmatprep.subr.bf16.mxu0 0
    %851 = vmatpush1.bf16.msra.mxu0 0
    %852 = vmatprep.subr.bf16.mxu0 0
    %853 = vmatpush1.bf16.msra.mxu0 0
    %854 = vmatprep.subr.bf16.mxu0 0
    %855 = vmatpush1.bf16.msra.mxu0 0
    %856 = vmatprep.subr.bf16.mxu0 0
    %857 = vmatpush1.bf16.msra.mxu0 0
    %858 = vmatprep.subr.bf16.mxu0 0
    %859 = vmatpush1.bf16.msra.mxu0 0
    %860 = vmatprep.subr.bf16.mxu0 0
    %861 = vmatpush1.bf16.msra.mxu0 0
    %862 = vmatprep.subr.bf16.mxu0 0
    %863 = vmatpush1.bf16.msra.mxu0 0
    %864 = vmatprep.subr.bf16.mxu0 0
    %865 = vmatpush1.bf16.msra.mxu0 0
    %866 = vmatprep.mubr.bf16.mxu0 0
    %867 = vmatmul.mubr.bf16.gmra.mrb[0].mxu0 %v832
    %v868 = vpop.f32.mrb[0].mxu0
    %v869 = vadd.f32 %v817, %v868
    %v870 = vpop.f32.mrb[0].mxu0
    %v871 = vpop.f32.mrb[0].mxu0
    %v872 = vadd.f32 %v817, %v871
    %v873 = vpop.f32.mrb[0].mxu0
    %874 = vdwg.mxu0
    %v875 = vmax.f32 %v869, 0.0
    %v876 = vmax.f32 %v872, 0.0
    %v877 = vpack.c.bf16 %v876, %v875
    %v878 = vld [vmem:[%s11] sm:$0xf]
    %v879 = vld [vmem:[%s11 + $0x4] sm:$0xf]
    %v880 = vld [vmem:[%s11 + $0x8] sm:$0xf]
    %v881 = vld [vmem:[%s11 + $0xc] sm:$0xf]
    %v882 = vld [vmem:[%s11 + $0x10] sm:$0xf]
    %v883 = vld [vmem:[%s11 + $0x14] sm:$0xf]
    %v884 = vld [vmem:[%s11 + $0x18] sm:$0xf]
    %v885 = vld [vmem:[%s11 + $0x1c] sm:$0xf]
    %v886 = vld [vmem:[%s12] sm:$0x1]
    %v888 = vlaneseq
    %v889 = vshrl.u32 %v888, 7
    %v890 = vsub.s32 0, %v889
    %v891 = vrot.slane %v886, %v890
    %v901 = vunpack.c.l.b16 %v878
    %v902 = vunpack.c.l.b16 %v879
    %v903 = vunpack.c.l.b16 %v880
    %v904 = vunpack.c.l.b16 %v881
    %v905 = vunpack.c.l.b16 %v882
    %v906 = vunpack.c.l.b16 %v883
    %v907 = vunpack.c.l.b16 %v884
    %v908 = vunpack.c.l.b16 %v885
    %v909 = vpack.c.b16 %v902, %v901
    %v910 = vpack.c.b16 %v904, %v903
    %v911 = vpack.c.b16 %v906, %v905
    %v912 = vpack.c.b16 %v908, %v907
    %vm917 = vcmask 523264
    %v919 = vsel %vm917, %v877, 0
    %921 = vmatprep.subr.bf16.mxu0 0
    %922 = vmatpush1.bf16.msra.mxu0 %v909
    %923 = vmatprep.subr.bf16.mxu0 0
    %924 = vmatpush1.bf16.msra.mxu0 %v910
    %925 = vmatprep.subr.bf16.mxu0 0
    %926 = vmatpush1.bf16.msra.mxu0 %v911
    %927 = vmatprep.subr.bf16.mxu0 0
    %928 = vmatpush1.bf16.msra.mxu0 %v912
    %929 = vmatprep.subr.bf16.mxu0 0
    %930 = vmatpush1.bf16.msra.mxu0 0
    %931 = vmatprep.subr.bf16.mxu0 0
    %932 = vmatpush1.bf16.msra.mxu0 0
    %933 = vmatprep.subr.bf16.mxu0 0
    %934 = vmatpush1.bf16.msra.mxu0 0
    %935 = vmatprep.subr.bf16.mxu0 0
    %936 = vmatpush1.bf16.msra.mxu0 0
    %937 = vmatprep.subr.bf16.mxu0 0
    %938 = vmatpush1.bf16.msra.mxu0 0
    %939 = vmatprep.subr.bf16.mxu0 0
    %940 = vmatpush1.bf16.msra.mxu0 0
    %941 = vmatprep.subr.bf16.mxu0 0
    %942 = vmatpush1.bf16.msra.mxu0 0
    %943 = vmatprep.subr.bf16.mxu0 0
    %944 = vmatpush1.bf16.msra.mxu0 0
    %945 = vmatprep.subr.bf16.mxu0 0
    %946 = vmatpush1.bf16.msra.mxu0 0
    %947 = vmatprep.subr.bf16.mxu0 0
    %948 = vmatpush1.bf16.msra.mxu0 0
    %949 = vmatprep.subr.bf16.mxu0 0
    %950 = vmatpush1.bf16.msra.mxu0 0
    %951 = vmatprep.subr.bf16.mxu0 0
    %952 = vmatpush1.bf16.msra.mxu0 0
    %953 = vmatprep.mubr.bf16.mxu0 0
    %954 = vmatmul.mubr.bf16.gmra.mrb[0].mxu0 %v919
    %v955 = vpop.f32.mrb[0].mxu0
    %v956 = vadd.f32 %v891, %v955
    %v957 = vpop.f32.mrb[0].mxu0
    %v958 = vpop.f32.mrb[0].mxu0
    %v959 = vadd.f32 %v891, %v958
    %v960 = vpop.f32.mrb[0].mxu0
    %961 = vdwg.mxu0
    %v962 = vadd.f32 %v761, %v956
    %v963 = vadd.f32 %v762, %v959
    %964 = vst.msk [vmem:[#allocation10] sm:$0xff] %vm97, %v962
    %965 = vst.msk [vmem:[#allocation10 + $0x8] sm:$0xff] %vm97, %v963
    // Predicated region
    $region70: #{tpu_custom_call.1} parent=1 // pred_check
      _
    $region71: #{tpu_custom_call.1} parent=1 // pred_check_branch
      %967 = sbr.rel (0) target = $region73
    $region72: #{tpu_custom_call.1} parent=1 // pred_region
      %s969 = ssub.s32 256, 256
      %970 = vsyncadd [#allocation4], %s969
      %s971 = sshll.u32 [#allocation10], 4
      %s972 = int_to_ptr.vmem [resolvable:$true] %s971
      %977 = dma.vmem_to_hbm [thread:$0]  %s972, 256, %s13, [#allocation4], 128, 128, 8
    $region73: #{tpu_custom_call.1} parent=1 // pred_fallthru
      _
    // Predicated region
    $region74: #{tpu_custom_call.1} parent=1 // pred_check
      _
    $region75: #{tpu_custom_call.1} parent=1 // pred_check_branch
      %979 = sbr.rel (0) target = $region77
    $region76: #{tpu_custom_call.1} parent=1 // pred_region
      %980 = dma.done [#allocation4], 256
    $region77: #{tpu_custom_call.1} parent=1 // pred_fallthru
      _
    %981 = vsyncpa [#allocation3], 1
    %982 = vsyncpa [#allocation6], 1
    %983 = vsyncpa [#allocation9], 1
    %984 = vsyncpa [#allocation4], 1

</llo_original>
